<compile_context>
chip_gen: v5e
topology: v5e:2x2
jax: 0.10.0
libtpu: 0.0.40
codegen_flags: <defaults>
</compile_context>

<pallas_src>
import jax
import jax.numpy as jnp
from jax.experimental import pallas as pl
from jax.experimental.pallas import tpu as pltpu


def _cdiv(a, b):
    return (a + b - 1) // b


def _round_up(x, m):
    return ((x + m - 1) // m) * m


def _make_mlp_kernel(num_layers, compute_dtype):
    """Kernel computing the whole tanh-MLP chain for one row-major batch block.

    refs = (x_ref (tile_n, d_in), w0 (h0, d_in), b0 (h0, 1), ...,
            w_{L-1}, b_{L-1}, out_ref (d_out, tile_n))
    """

    def kernel(*refs):
        x_ref = refs[0]
        out_ref = refs[-1]
        p = refs[1:-1]
        cast = compute_dtype != jnp.float32

        u = None
        for i in range(num_layers):
            w = p[2 * i][...]                      # (d_out_i, d_in_i)
            b = p[2 * i + 1][...]                  # (d_out_i, 1) -> broadcasts over lanes
            if cast:
                w = w.astype(compute_dtype)
            if i == 0:
                xin = x_ref[...]                   # (tile_n, d_in), row-major block
                if cast:
                    xin = xin.astype(compute_dtype)
                # Fold the input transpose into the MXU matmul: contract on the
                # RHS minor dim (same pattern as q @ k.T in attention kernels).
                # Result is (h0, tile_n) with batch on the lane axis.
                u = jax.lax.dot_general(
                    w, xin,
                    dimension_numbers=(((1,), (1,)), ((), ())),
                    preferred_element_type=jnp.float32,
                )
            else:
                u = jnp.dot(w, u, preferred_element_type=jnp.float32)
            u = u + b                              # f32 bias add
            if i < num_layers - 1:
                if cast:
                    # bf16 tanh: EUP is bf16-native on v6e/v7x (binding unit);
                    # also halves the activation fed into the next matmul.
                    u = jnp.tanh(u.astype(compute_dtype))
                else:
                    u = jnp.tanh(u)
        out_ref[...] = u.astype(out_ref.dtype)

    return kernel


def schrodinger_pinn_forward(X, params, *, tile_n=2048, use_bf16=False,
                             transposed_output=False):
    """Fused Pallas forward for SchrodingerPINN.

    X:      (N, d_in) float32, row-major as produced by the collocation sampler.
            No wrapper-side transpose/pad HBM pass is performed.
    params: list of (W, b) in PyTorch nn.Linear layout, W: (d_out_i, d_in_i),
            b: (d_out_i,) or (d_out_i, 1).
    Returns (N, d_out) float32, or (d_out, N) if transposed_output=True
    (zero extra work; convenient when the caller splits Re/Im anyway).
    """
    num_layers = len(params)
    N, d_in = X.shape
    d_out = params[-1][0].shape[0]

    # ---- batch tile selection -------------------------------------------
    # Multiple of 256 (v6e/v7x MXU width); large default so the ~0.35us/step
    # grid overhead is negligible; capped so the grid keeps >= 2 steps when
    # the batch allows it (v7x megacore: "parallel" axes shard across 2 TCs).
    tile_n = max(256, (int(tile_n) // 256) * 256)
    tile_n = min(tile_n, _round_up(max(_cdiv(N, 2), 1), 256))
    num_blocks = _cdiv(N, tile_n)
    # Ragged tails (N % tile_n != 0) are handled by Pallas boundary clipping:
    # out-of-range lanes compute on padding and are dropped on writeback.

    compute_dtype = jnp.bfloat16 if use_bf16 else jnp.float32
    # NOTE(v5e): leave use_bf16=False there (no bf16 VPU/EUP -> casts only).

    X = X.astype(jnp.float32)
    flat_params = []
    for w, b in params:
        w = jnp.asarray(w, jnp.float32)
        flat_params.append(w)
        flat_params.append(jnp.asarray(b, jnp.float32).reshape(w.shape[0], 1))

    x_spec = pl.BlockSpec((tile_n, d_in), lambda i: (i, 0))
    # ~10 KB of weights/biases: whole-array resident in VMEM, no per-step DMA.
    param_specs = [
        pl.BlockSpec(memory_space=pltpu.MemorySpace.VMEM) for _ in flat_params
    ]
    out_spec = pl.BlockSpec((d_out, tile_n), lambda i: (0, i))

    # Advisory cost on the actually-executed (padded-to-tile) grid so XLA
    # schedules the surrounding PINN autodiff graph around the real cost.
    n_work = num_blocks * tile_n
    flops = 2 * n_work * sum(int(w.shape[0]) * int(w.shape[1]) for w, _ in params)
    transcendentals = n_work * sum(int(w.shape[0]) for w, _ in params[:-1])
    bytes_accessed = 4 * (
        N * (d_in + d_out) + sum(int(w.size) + int(b.size) for w, b in params)
    )

    out_t = pl.pallas_call(
        _make_mlp_kernel(num_layers, compute_dtype),
        out_shape=jax.ShapeDtypeStruct((d_out, N), jnp.float32),
        grid_spec=pltpu.PrefetchScalarGridSpec(
            num_scalar_prefetch=0,
            grid=(num_blocks,),
            in_specs=[x_spec] + param_specs,
            out_specs=out_spec,
        ),
        compiler_params=pltpu.CompilerParams(
            dimension_semantics=("parallel",),
        ),
        cost_estimate=pl.CostEstimate(
            flops=flops,
            transcendentals=transcendentals,
            bytes_accessed=bytes_accessed,
        ),
    )(X, *flat_params)

    if transposed_output:
        return out_t
    # (d_out, N) -> (N, d_out): d_out == 2, so this is a tiny 8*N-byte pass;
    # prefer transposed_output=True inside a training loop to skip it entirely.
    return out_t.T


def init_pinn_params(key, layers):
    """Xavier-normal weights (PyTorch (d_out, d_in) layout), zero biases."""
    params = []
    for i in range(len(layers) - 1):
        fan_in, fan_out = layers[i], layers[i + 1]
        key, sub = jax.random.split(key)
        std = jnp.sqrt(2.0 / (fan_in + fan_out))      # xavier_normal_ gain=1
        w = std * jax.random.normal(sub, (fan_out, fan_in), dtype=jnp.float32)
        b = jnp.zeros((fan_out, 1), dtype=jnp.float32)
        params.append((w, b))
    return params


def reference_forward(X, params):
    """Pure-JAX reference identical to the PyTorch module's forward."""
    u = X
    for i, (w, b) in enumerate(params):
        u = u @ w.T + b.reshape(-1)
        if i < len(params) - 1:
            u = jnp.tanh(u)
    return u


if __name__ == "__main__":
    # layers: input (x, y, z, t) -> hidden -> ... -> (Re(psi), Im(psi))
    layers = [4, 32, 32, 32, 2]
    batch = 300   # not a multiple of the tile: exercises the boundary-clip path

    key = jax.random.PRNGKey(0)
    key, k_x = jax.random.split(key)
    X = jax.random.normal(k_x, (batch, layers[0]), dtype=jnp.float32)
    params = init_pinn_params(key, layers)

    ref = reference_forward(X, params)

    # f32 path (matches the PyTorch-equivalent reference).
    out = jax.block_until_ready(schrodinger_pinn_forward(X, params, tile_n=2048))
    assert out.shape == (batch, layers[-1])
    assert jnp.allclose(out, ref, atol=1e-5, rtol=1e-5)

    # Transposed-output path (zero extra work; Re/Im split is out_t[0]/out_t[1]).
    out_t = jax.block_until_ready(
        schrodinger_pinn_forward(X, params, tile_n=2048, transposed_output=True))
    assert out_t.shape == (layers[-1], batch)
    assert jnp.allclose(out_t.T, ref, atol=1e-5, rtol=1e-5)

    # Optional bf16 matmul/tanh path (intended for v6e/v7x; keep False on v5e).
    out_bf16 = jax.block_until_ready(
        schrodinger_pinn_forward(X, params, tile_n=2048, use_bf16=True))
    assert out_bf16.shape == (batch, layers[-1])
    assert bool(jnp.all(jnp.isfinite(out_bf16)))
    assert jnp.allclose(out_bf16, ref, atol=1e-1, rtol=1e-1)

    print("KERNEL_OK")
</pallas_src>

<mosaic_0001>
module attributes {stable_mosaic.version = 11 : i64} {
  func.func @kernel(%arg0: i32, %arg1: memref<256x4xf32, #tpu.memory_space<vmem>>, %arg2: memref<32x4xf32, #tpu.memory_space<vmem>>, %arg3: memref<32x1xf32, #tpu.memory_space<vmem>>, %arg4: memref<32x32xf32, #tpu.memory_space<vmem>>, %arg5: memref<32x1xf32, #tpu.memory_space<vmem>>, %arg6: memref<32x32xf32, #tpu.memory_space<vmem>>, %arg7: memref<32x1xf32, #tpu.memory_space<vmem>>, %arg8: memref<2x32xf32, #tpu.memory_space<vmem>>, %arg9: memref<2x1xf32, #tpu.memory_space<vmem>>, %arg10: memref<2x256xf32, #tpu.memory_space<vmem>>) attributes {dimension_semantics = [#tpu.dimension_semantics<parallel>], iteration_bounds = array<i64: 2>, scalar_prefetch = 0 : i64, scratch_operands = 0 : i64, tpu.core_type = #tpu.core_type<tc>, window_params = [{transform_indices = @transform_0, window_bounds = array<i64: 256, 4>}, {pipeline_mode = #tpu.pipeline_mode<synchronous>, transform_indices = @transform_1, window_bounds = array<i64: 32, 4>}, {pipeline_mode = #tpu.pipeline_mode<synchronous>, transform_indices = @transform_2, window_bounds = array<i64: 32, 1>}, {pipeline_mode = #tpu.pipeline_mode<synchronous>, transform_indices = @transform_3, window_bounds = array<i64: 32, 32>}, {pipeline_mode = #tpu.pipeline_mode<synchronous>, transform_indices = @transform_4, window_bounds = array<i64: 32, 1>}, {pipeline_mode = #tpu.pipeline_mode<synchronous>, transform_indices = @transform_5, window_bounds = array<i64: 32, 32>}, {pipeline_mode = #tpu.pipeline_mode<synchronous>, transform_indices = @transform_6, window_bounds = array<i64: 32, 1>}, {pipeline_mode = #tpu.pipeline_mode<synchronous>, transform_indices = @transform_7, window_bounds = array<i64: 2, 32>}, {pipeline_mode = #tpu.pipeline_mode<synchronous>, transform_indices = @transform_8, window_bounds = array<i64: 2, 1>}, {transform_indices = @transform_9, window_bounds = array<i64: 2, 256>}]} {
    %c0 = arith.constant 0 : index
    %c0_0 = arith.constant 0 : index
    %0 = vector.load %arg2[%c0, %c0_0] : memref<32x4xf32, #tpu.memory_space<vmem>>, vector<32x4xf32>
    %c0_1 = arith.constant 0 : index
    %c0_2 = arith.constant 0 : index
    %1 = vector.load %arg3[%c0_1, %c0_2] : memref<32x1xf32, #tpu.memory_space<vmem>>, vector<32x1xf32>
    %c0_3 = arith.constant 0 : index
    %c0_4 = arith.constant 0 : index
    %2 = vector.load %arg1[%c0_3, %c0_4] : memref<256x4xf32, #tpu.memory_space<vmem>>, vector<256x4xf32>
    %cst = arith.constant dense<0.000000e+00> : vector<32x256xf32>
    %3 = tpu.matmul %0, %2, %cst {dimension_numbers = #tpu.dot_dimension_numbers<[1], [1], [0], [0], [0, 0, 1, 0], [], []>} : vector<32x4xf32>, vector<256x4xf32>, vector<32x256xf32> -> vector<32x256xf32>
    %4 = vector.broadcast %1 : vector<32x1xf32> to vector<32x256xf32>
    %5 = arith.addf %3, %4 : vector<32x256xf32>
    %6 = math.tanh %5 : vector<32x256xf32>
    %c0_5 = arith.constant 0 : index
    %c0_6 = arith.constant 0 : index
    %7 = vector.load %arg4[%c0_5, %c0_6] : memref<32x32xf32, #tpu.memory_space<vmem>>, vector<32x32xf32>
    %c0_7 = arith.constant 0 : index
    %c0_8 = arith.constant 0 : index
    %8 = vector.load %arg5[%c0_7, %c0_8] : memref<32x1xf32, #tpu.memory_space<vmem>>, vector<32x1xf32>
    %cst_9 = arith.constant dense<0.000000e+00> : vector<32x256xf32>
    %9 = tpu.matmul %7, %6, %cst_9 {dimension_numbers = #tpu.dot_dimension_numbers<[1], [0], [0], [1], [0, 0, 1, 1], [], []>} : vector<32x32xf32>, vector<32x256xf32>, vector<32x256xf32> -> vector<32x256xf32>
    %10 = vector.broadcast %8 : vector<32x1xf32> to vector<32x256xf32>
    %11 = arith.addf %9, %10 : vector<32x256xf32>
    %12 = math.tanh %11 : vector<32x256xf32>
    %c0_10 = arith.constant 0 : index
    %c0_11 = arith.constant 0 : index
    %13 = vector.load %arg6[%c0_10, %c0_11] : memref<32x32xf32, #tpu.memory_space<vmem>>, vector<32x32xf32>
    %c0_12 = arith.constant 0 : index
    %c0_13 = arith.constant 0 : index
    %14 = vector.load %arg7[%c0_12, %c0_13] : memref<32x1xf32, #tpu.memory_space<vmem>>, vector<32x1xf32>
    %cst_14 = arith.constant dense<0.000000e+00> : vector<32x256xf32>
    %15 = tpu.matmul %13, %12, %cst_14 {dimension_numbers = #tpu.dot_dimension_numbers<[1], [0], [0], [1], [0, 0, 1, 1], [], []>} : vector<32x32xf32>, vector<32x256xf32>, vector<32x256xf32> -> vector<32x256xf32>
    %16 = vector.broadcast %14 : vector<32x1xf32> to vector<32x256xf32>
    %17 = arith.addf %15, %16 : vector<32x256xf32>
    %18 = math.tanh %17 : vector<32x256xf32>
    %c0_15 = arith.constant 0 : index
    %c0_16 = arith.constant 0 : index
    %19 = vector.load %arg8[%c0_15, %c0_16] : memref<2x32xf32, #tpu.memory_space<vmem>>, vector<2x32xf32>
    %c0_17 = arith.constant 0 : index
    %c0_18 = arith.constant 0 : index
    %20 = vector.load %arg9[%c0_17, %c0_18] : memref<2x1xf32, #tpu.memory_space<vmem>>, vector<2x1xf32>
    %cst_19 = arith.constant dense<0.000000e+00> : vector<2x256xf32>
    %21 = tpu.matmul %19, %18, %cst_19 {dimension_numbers = #tpu.dot_dimension_numbers<[1], [0], [0], [1], [0, 0, 1, 1], [], []>} : vector<2x32xf32>, vector<32x256xf32>, vector<2x256xf32> -> vector<2x256xf32>
    %22 = vector.broadcast %20 : vector<2x1xf32> to vector<2x256xf32>
    %23 = arith.addf %21, %22 : vector<2x256xf32>
    %c0_20 = arith.constant 0 : index
    %c0_21 = arith.constant 0 : index
    %24 = vector.load %arg10[%c0_20, %c0_21] : memref<2x256xf32, #tpu.memory_space<vmem>>, vector<2x256xf32>
    tpu.vector_store %arg10[%c0_20, %c0_21], %23 {strides = array<i32>} : memref<2x256xf32, #tpu.memory_space<vmem>>, vector<2x256xf32>,
    return
  }
  func.func @transform_0(%arg0: i32) -> (i32, i32) {
    %c0_i32 = arith.constant 0 : i32
    %c0_i32_0 = arith.constant 0 : i32
    return %arg0, %c0_i32 : i32, i32
  }
  func.func @transform_1(%arg0: i32) -> (i32, i32) {
    %c0_i32 = arith.constant 0 : i32
    %c0_i32_0 = arith.constant 0 : i32
    %c0_i32_1 = arith.constant 0 : i32
    return %c0_i32, %c0_i32_0 : i32, i32
  }
  func.func @transform_2(%arg0: i32) -> (i32, i32) {
    %c0_i32 = arith.constant 0 : i32
    %c0_i32_0 = arith.constant 0 : i32
    %c0_i32_1 = arith.constant 0 : i32
    return %c0_i32, %c0_i32_0 : i32, i32
  }
  func.func @transform_3(%arg0: i32) -> (i32, i32) {
    %c0_i32 = arith.constant 0 : i32
    %c0_i32_0 = arith.constant 0 : i32
    %c0_i32_1 = arith.constant 0 : i32
    return %c0_i32, %c0_i32_0 : i32, i32
  }
  func.func @transform_4(%arg0: i32) -> (i32, i32) {
    %c0_i32 = arith.constant 0 : i32
    %c0_i32_0 = arith.constant 0 : i32
    %c0_i32_1 = arith.constant 0 : i32
    return %c0_i32, %c0_i32_0 : i32, i32
  }
  func.func @transform_5(%arg0: i32) -> (i32, i32) {
    %c0_i32 = arith.constant 0 : i32
    %c0_i32_0 = arith.constant 0 : i32
    %c0_i32_1 = arith.constant 0 : i32
    return %c0_i32, %c0_i32_0 : i32, i32
  }
  func.func @transform_6(%arg0: i32) -> (i32, i32) {
    %c0_i32 = arith.constant 0 : i32
    %c0_i32_0 = arith.constant 0 : i32
    %c0_i32_1 = arith.constant 0 : i32
    return %c0_i32, %c0_i32_0 : i32, i32
  }
  func.func @transform_7(%arg0: i32) -> (i32, i32) {
    %c0_i32 = arith.constant 0 : i32
    %c0_i32_0 = arith.constant 0 : i32
    %c0_i32_1 = arith.constant 0 : i32
    return %c0_i32, %c0_i32_0 : i32, i32
  }
  func.func @transform_8(%arg0: i32) -> (i32, i32) {
    %c0_i32 = arith.constant 0 : i32
    %c0_i32_0 = arith.constant 0 : i32
    %c0_i32_1 = arith.constant 0 : i32
    return %c0_i32, %c0_i32_0 : i32, i32
  }
  func.func @transform_9(%arg0: i32) -> (i32, i32) {
    %c0_i32 = arith.constant 0 : i32
    %c0_i32_0 = arith.constant 0 : i32
    return %c0_i32, %arg0 : i32, i32
  }
}

</mosaic_0001>

<llo_original>
// kernel: tpu_custom_call.1
$region0: #{tpu_custom_call.1}
  #allocation0 [shape = 'u32[]', space=smem, size = 0x4, offset = 0x4, fixed_abs, tag = 'smem constant byte address 0x4 - core index']
  #allocation1 [shape = 'u32[72,128]{1,0:T(1,128)}', space=vmem, size = 0x9000, scoped, tag = 'internal scratch']
  %s0 = inlined_call_operand.vmem [shape: f32[300,4], index: 0, kind: input, shape index: {}]
  %s1 = inlined_call_operand.vmem [shape: f32[32,4], index: 1, kind: input, shape index: {}]
  %s2 = inlined_call_operand.vmem [shape: f32[32,1], index: 2, kind: input, shape index: {}]
  %s3 = inlined_call_operand.vmem [shape: f32[32,32], index: 3, kind: input, shape index: {}]
  %s4 = inlined_call_operand.vmem [shape: f32[32,1], index: 4, kind: input, shape index: {}]
  %s5 = inlined_call_operand.vmem [shape: f32[32,32], index: 5, kind: input, shape index: {}]
  %s6 = inlined_call_operand.vmem [shape: f32[32,1], index: 6, kind: input, shape index: {}]
  %s7 = inlined_call_operand.vmem [shape: f32[2,32], index: 7, kind: input, shape index: {}]
  %s8 = inlined_call_operand.vmem [shape: f32[2,1], index: 8, kind: input, shape index: {}]
  %s9 = inlined_call_operand.hbm [shape: f32[2,300], index: 9, kind: output, shape index: {}]
  %s10 = sld [smem:[#allocation0]]
  $region69: #{tpu_custom_call.1} parent=0
    _
  %s12 = ssub.s32 1, %s10
  %s13 = scalar_select 0, %s12, %s10
  $region1: #{tpu_custom_call.1} parent=0
    #allocation2 [shape = 'u8[4096]{0}', space=vmem, size = 0x1000, scoped, tag = 'output window, operand 0']
    #allocation3 [shape = 's32[2]{0}', space=sflag, size = 0x8, scoped, tag = 'scoped memory for tpu_custom_call.1']
    %14 = vsyncpa [#allocation3], 0
    %s15 = scalar_lea.sflag [#allocation3], 1
    %16 = vsyncpa %s15, 0
    loop: start=0, step=1, limit=4
    $region2: #{tpu_custom_call.1} parent=1 // loop_pre_header
      _
    $region3: #{tpu_custom_call.1} parent=1 // loop_header
      %s18 = sphi 0, %s22
      %p19 = scmp.ge.s32.totalorder %s18, 4
      %s28 = sphi 0, %s30
      %s31 = sphi 0, %s28
      %s32 = sphi 0, %s31
      %s48 = sphi 0, %s32
      %s52 = sphi 0, %s52
      %s54 = sphi 0, %s52
      %s55 = sphi 0, %s54
      %s69 = sphi 0, %s55
      %s73 = sphi 0, %s73
      %s75 = sphi 0, %s73
      %s76 = sphi 0, %s75
      %s90 = sphi 0, %s76
      %s94 = sphi 0, %s94
      %s96 = sphi 0, %s94
      %s97 = sphi 0, %s96
      %s111 = sphi 0, %s97
      %s115 = sphi 0, %s115
      %s117 = sphi 0, %s115
      %s118 = sphi 0, %s117
      %s132 = sphi 0, %s118
      %s136 = sphi 0, %s136
      %s138 = sphi 0, %s136
      %s139 = sphi 0, %s138
      %s153 = sphi 0, %s139
      %s157 = sphi 0, %s157
      %s159 = sphi 0, %s157
      %s160 = sphi 0, %s159
      %s174 = sphi 0, %s160
      %s178 = sphi 0, %s178
      %s180 = sphi 0, %s178
      %s181 = sphi 0, %s180
      %s195 = sphi 0, %s181
      %s199 = sphi 0, %s199
      %s201 = sphi 0, %s199
      %s202 = sphi 0, %s201
      %s216 = sphi 0, %s202
      %s222 = sphi 0, %s224
      %s225 = sphi 0, %s222
      %s226 = sphi 0, %s225
      %s242 = sphi 0, %s226
    $region4: #{tpu_custom_call.1} parent=1 // loop_header_branch
      %21 = sbr.rel (%p19) target = $region8
    $region5: #{tpu_custom_call.1} parent=1 // loop_body
      %s23 = ssub.s32 %s18, 1
      %s24 = ssub.s32 %s18, 2
      %s25 = sadd.s32 %s18, 1
      %s26 = ssub.s32 %s18, %s25
      %p27 = scmp.eq.s32.totalorder %s26, 0
      %s29 = sadd.s32 %s28, 1
      %s30 = scalar_select %p27, %s28, %s29
      %p33 = pneg %p27
      %p34 = scmp.eq.s32.totalorder %s18, 1
      %p35 = por %p33, %p34
      %p36 = scmp.ne.s32.totalorder %s28, %s31
      %p37 = scmp.eq.s32.totalorder %s18, 0
      %p38 = por %p36, %p37
      %p39 = scmp.ne.s32.totalorder %s28, %s31
      %p40 = scmp.eq.s32.totalorder %s23, 1
      %p41 = por %p39, %p40
      %p42 = scmp.ne.s32.totalorder %s31, %s32
      %p43 = scmp.eq.s32.totalorder %s23, 0
      %p44 = por %p42, %p43
      %p45 = scmp.ne.s32.totalorder %s31, %s32
      %p46 = scmp.eq.s32.totalorder %s24, 1
      %p47 = por %p45, %p46
      %p49 = scmp.ne.s32.totalorder %s32, %s48
      %p50 = scmp.eq.s32.totalorder %s24, 0
      %p51 = por %p49, %p50
      %s53 = sadd.s32 %s52, 1
      %p56 = scmp.eq.s32.totalorder %s18, 1
      %p57 = scmp.ne.s32.totalorder %s52, %s54
      %p58 = scmp.eq.s32.totalorder %s18, 0
      %p59 = por %p57, %p58
      %p60 = scmp.ne.s32.totalorder %s52, %s54
      %p61 = scmp.eq.s32.totalorder %s23, 1
      %p62 = por %p60, %p61
      %p63 = scmp.ne.s32.totalorder %s54, %s55
      %p64 = scmp.eq.s32.totalorder %s23, 0
      %p65 = por %p63, %p64
      %p66 = scmp.ne.s32.totalorder %s54, %s55
      %p67 = scmp.eq.s32.totalorder %s24, 1
      %p68 = por %p66, %p67
      %p70 = scmp.ne.s32.totalorder %s55, %s69
      %p71 = scmp.eq.s32.totalorder %s24, 0
      %p72 = por %p70, %p71
      %s74 = sadd.s32 %s73, 1
      %p77 = scmp.eq.s32.totalorder %s18, 1
      %p78 = scmp.ne.s32.totalorder %s73, %s75
      %p79 = scmp.eq.s32.totalorder %s18, 0
      %p80 = por %p78, %p79
      %p81 = scmp.ne.s32.totalorder %s73, %s75
      %p82 = scmp.eq.s32.totalorder %s23, 1
      %p83 = por %p81, %p82
      %p84 = scmp.ne.s32.totalorder %s75, %s76
      %p85 = scmp.eq.s32.totalorder %s23, 0
      %p86 = por %p84, %p85
      %p87 = scmp.ne.s32.totalorder %s75, %s76
      %p88 = scmp.eq.s32.totalorder %s24, 1
      %p89 = por %p87, %p88
      %p91 = scmp.ne.s32.totalorder %s76, %s90
      %p92 = scmp.eq.s32.totalorder %s24, 0
      %p93 = por %p91, %p92
      %s95 = sadd.s32 %s94, 1
      %p98 = scmp.eq.s32.totalorder %s18, 1
      %p99 = scmp.ne.s32.totalorder %s94, %s96
      %p100 = scmp.eq.s32.totalorder %s18, 0
      %p101 = por %p99, %p100
      %p102 = scmp.ne.s32.totalorder %s94, %s96
      %p103 = scmp.eq.s32.totalorder %s23, 1
      %p104 = por %p102, %p103
      %p105 = scmp.ne.s32.totalorder %s96, %s97
      %p106 = scmp.eq.s32.totalorder %s23, 0
      %p107 = por %p105, %p106
      %p108 = scmp.ne.s32.totalorder %s96, %s97
      %p109 = scmp.eq.s32.totalorder %s24, 1
      %p110 = por %p108, %p109
      %p112 = scmp.ne.s32.totalorder %s97, %s111
      %p113 = scmp.eq.s32.totalorder %s24, 0
      %p114 = por %p112, %p113
      %s116 = sadd.s32 %s115, 1
      %p119 = scmp.eq.s32.totalorder %s18, 1
      %p120 = scmp.ne.s32.totalorder %s115, %s117
      %p121 = scmp.eq.s32.totalorder %s18, 0
      %p122 = por %p120, %p121
      %p123 = scmp.ne.s32.totalorder %s115, %s117
      %p124 = scmp.eq.s32.totalorder %s23, 1
      %p125 = por %p123, %p124
      %p126 = scmp.ne.s32.totalorder %s117, %s118
      %p127 = scmp.eq.s32.totalorder %s23, 0
      %p128 = por %p126, %p127
      %p129 = scmp.ne.s32.totalorder %s117, %s118
      %p130 = scmp.eq.s32.totalorder %s24, 1
      %p131 = por %p129, %p130
      %p133 = scmp.ne.s32.totalorder %s118, %s132
      %p134 = scmp.eq.s32.totalorder %s24, 0
      %p135 = por %p133, %p134
      %s137 = sadd.s32 %s136, 1
      %p140 = scmp.eq.s32.totalorder %s18, 1
      %p141 = scmp.ne.s32.totalorder %s136, %s138
      %p142 = scmp.eq.s32.totalorder %s18, 0
      %p143 = por %p141, %p142
      %p144 = scmp.ne.s32.totalorder %s136, %s138
      %p145 = scmp.eq.s32.totalorder %s23, 1
      %p146 = por %p144, %p145
      %p147 = scmp.ne.s32.totalorder %s138, %s139
      %p148 = scmp.eq.s32.totalorder %s23, 0
      %p149 = por %p147, %p148
      %p150 = scmp.ne.s32.totalorder %s138, %s139
      %p151 = scmp.eq.s32.totalorder %s24, 1
      %p152 = por %p150, %p151
      %p154 = scmp.ne.s32.totalorder %s139, %s153
      %p155 = scmp.eq.s32.totalorder %s24, 0
      %p156 = por %p154, %p155
      %s158 = sadd.s32 %s157, 1
      %p161 = scmp.eq.s32.totalorder %s18, 1
      %p162 = scmp.ne.s32.totalorder %s157, %s159
      %p163 = scmp.eq.s32.totalorder %s18, 0
      %p164 = por %p162, %p163
      %p165 = scmp.ne.s32.totalorder %s157, %s159
      %p166 = scmp.eq.s32.totalorder %s23, 1
      %p167 = por %p165, %p166
      %p168 = scmp.ne.s32.totalorder %s159, %s160
      %p169 = scmp.eq.s32.totalorder %s23, 0
      %p170 = por %p168, %p169
      %p171 = scmp.ne.s32.totalorder %s159, %s160
      %p172 = scmp.eq.s32.totalorder %s24, 1
      %p173 = por %p171, %p172
      %p175 = scmp.ne.s32.totalorder %s160, %s174
      %p176 = scmp.eq.s32.totalorder %s24, 0
      %p177 = por %p175, %p176
      %s179 = sadd.s32 %s178, 1
      %p182 = scmp.eq.s32.totalorder %s18, 1
      %p183 = scmp.ne.s32.totalorder %s178, %s180
      %p184 = scmp.eq.s32.totalorder %s18, 0
      %p185 = por %p183, %p184
      %p186 = scmp.ne.s32.totalorder %s178, %s180
      %p187 = scmp.eq.s32.totalorder %s23, 1
      %p188 = por %p186, %p187
      %p189 = scmp.ne.s32.totalorder %s180, %s181
      %p190 = scmp.eq.s32.totalorder %s23, 0
      %p191 = por %p189, %p190
      %p192 = scmp.ne.s32.totalorder %s180, %s181
      %p193 = scmp.eq.s32.totalorder %s24, 1
      %p194 = por %p192, %p193
      %p196 = scmp.ne.s32.totalorder %s181, %s195
      %p197 = scmp.eq.s32.totalorder %s24, 0
      %p198 = por %p196, %p197
      %s200 = sadd.s32 %s199, 1
      %p203 = scmp.eq.s32.totalorder %s18, 1
      %p204 = scmp.ne.s32.totalorder %s199, %s201
      %p205 = scmp.eq.s32.totalorder %s18, 0
      %p206 = por %p204, %p205
      %p207 = scmp.ne.s32.totalorder %s199, %s201
      %p208 = scmp.eq.s32.totalorder %s23, 1
      %p209 = por %p207, %p208
      %p210 = scmp.ne.s32.totalorder %s201, %s202
      %p211 = scmp.eq.s32.totalorder %s23, 0
      %p212 = por %p210, %p211
      %p213 = scmp.ne.s32.totalorder %s201, %s202
      %p214 = scmp.eq.s32.totalorder %s24, 1
      %p215 = por %p213, %p214
      %p217 = scmp.ne.s32.totalorder %s202, %s216
      %p218 = scmp.eq.s32.totalorder %s24, 0
      %p219 = por %p217, %p218
      %s220 = ssub.s32 %s18, %s25
      %p221 = scmp.eq.s32.totalorder %s220, 0
      %s223 = sadd.s32 %s222, 1
      %s224 = scalar_select %p221, %s222, %s223
      %p227 = pneg %p221
      %p228 = scmp.eq.s32.totalorder %s18, 1
      %p229 = por %p227, %p228
      %p230 = scmp.ne.s32.totalorder %s222, %s225
      %p231 = scmp.eq.s32.totalorder %s18, 0
      %p232 = por %p230, %p231
      %p233 = scmp.ne.s32.totalorder %s222, %s225
      %p234 = scmp.eq.s32.totalorder %s23, 1
      %p235 = por %p233, %p234
      %p236 = scmp.ne.s32.totalorder %s225, %s226
      %p237 = scmp.eq.s32.totalorder %s23, 0
      %p238 = por %p236, %p237
      %p239 = scmp.ne.s32.totalorder %s225, %s226
      %p240 = scmp.eq.s32.totalorder %s24, 1
      %p241 = por %p239, %p240
      %p243 = scmp.ne.s32.totalorder %s226, %s242
      %p244 = scmp.eq.s32.totalorder %s24, 0
      %p245 = por %p243, %p244
      %p246 = scmp.le.s32.totalorder 1, %s18
      %p247 = scmp.lt.s32.totalorder %s18, 3
      %p248 = pnand %p246, %p247
      %p249 = pneg %p248
      // Predicated region
      $region9: #{tpu_custom_call.1} parent=5 // pred_check
        _
      $region10: #{tpu_custom_call.1} parent=5 // pred_check_branch
        %251 = sbr.rel (%p248) target = $region12
      $region11: #{tpu_custom_call.1} parent=5 // pred_region
        %s252 = ssub.s32 %s18, 1
        // Predicated region
        $region13: #{tpu_custom_call.1} parent=11 // pred_check
          %p253 = pneg %p65
        $region14: #{tpu_custom_call.1} parent=11 // pred_check_branch
          %255 = sbr.rel (%p253) target = $region16
        $region15: #{tpu_custom_call.1} parent=11 // pred_region
          _
        $region16: #{tpu_custom_call.1} parent=11 // pred_fallthru
          _
        // Predicated region
        $region17: #{tpu_custom_call.1} parent=11 // pred_check
          %p256 = pneg %p86
        $region18: #{tpu_custom_call.1} parent=11 // pred_check_branch
          %258 = sbr.rel (%p256) target = $region20
        $region19: #{tpu_custom_call.1} parent=11 // pred_region
          _
        $region20: #{tpu_custom_call.1} parent=11 // pred_fallthru
          _
        // Predicated region
        $region21: #{tpu_custom_call.1} parent=11 // pred_check
          %p259 = pneg %p107
        $region22: #{tpu_custom_call.1} parent=11 // pred_check_branch
          %261 = sbr.rel (%p259) target = $region24
        $region23: #{tpu_custom_call.1} parent=11 // pred_region
          _
        $region24: #{tpu_custom_call.1} parent=11 // pred_fallthru
          _
        // Predicated region
        $region25: #{tpu_custom_call.1} parent=11 // pred_check
          %p262 = pneg %p128
        $region26: #{tpu_custom_call.1} parent=11 // pred_check_branch
          %264 = sbr.rel (%p262) target = $region28
        $region27: #{tpu_custom_call.1} parent=11 // pred_region
          _
        $region28: #{tpu_custom_call.1} parent=11 // pred_fallthru
          _
        // Predicated region
        $region29: #{tpu_custom_call.1} parent=11 // pred_check
          %p265 = pneg %p149
        $region30: #{tpu_custom_call.1} parent=11 // pred_check_branch
          %267 = sbr.rel (%p265) target = $region32
        $region31: #{tpu_custom_call.1} parent=11 // pred_region
          _
        $region32: #{tpu_custom_call.1} parent=11 // pred_fallthru
          _
        // Predicated region
        $region33: #{tpu_custom_call.1} parent=11 // pred_check
          %p268 = pneg %p170
        $region34: #{tpu_custom_call.1} parent=11 // pred_check_branch
          %270 = sbr.rel (%p268) target = $region36
        $region35: #{tpu_custom_call.1} parent=11 // pred_region
          _
        $region36: #{tpu_custom_call.1} parent=11 // pred_fallthru
          _
        // Predicated region
        $region37: #{tpu_custom_call.1} parent=11 // pred_check
          %p271 = pneg %p191
        $region38: #{tpu_custom_call.1} parent=11 // pred_check_branch
          %273 = sbr.rel (%p271) target = $region40
        $region39: #{tpu_custom_call.1} parent=11 // pred_region
          _
        $region40: #{tpu_custom_call.1} parent=11 // pred_fallthru
          _
        // Predicated region
        $region41: #{tpu_custom_call.1} parent=11 // pred_check
          %p274 = pneg %p212
        $region42: #{tpu_custom_call.1} parent=11 // pred_check_branch
          %276 = sbr.rel (%p274) target = $region44
        $region43: #{tpu_custom_call.1} parent=11 // pred_region
          _
        $region44: #{tpu_custom_call.1} parent=11 // pred_fallthru
          _
      $region12: #{tpu_custom_call.1} parent=5 // pred_fallthru
        _
      %p277 = scmp.lt.s32.totalorder %s18, 2
      // Predicated region
      $region45: #{tpu_custom_call.1} parent=5 // pred_check
        %p278 = pneg %p277
      $region46: #{tpu_custom_call.1} parent=5 // pred_check_branch
        %280 = sbr.rel (%p278) target = $region48
      $region47: #{tpu_custom_call.1} parent=5 // pred_region
        // Predicated region
        $region49: #{tpu_custom_call.1} parent=47 // pred_check
          %p281 = pneg %p38
        $region50: #{tpu_custom_call.1} parent=47 // pred_check_branch
          %283 = sbr.rel (%p281) target = $region52
        $region51: #{tpu_custom_call.1} parent=47 // pred_region
          %s284 = smul.u32 32, %s18
          %s285 = ssub.s32 38, %s284
          %p286 = scmp.lt.s32.totalorder %s285, 32
          %s287 = scalar_select %p286, %s285, 32
          %s288 = smul.u32 8, %s287
          %p289 = scmp.lt.s32.totalorder %s284, 37
          %s290 = scalar_select %p289, %s284, 37
          %s291 = smul.addr %s290, 8
          %s292 = scalar_lea.vmem %s0, %s291
          %s293 = smul.u32 32, %s18
          %s294 = ssub.s32 38, %s293
          %p295 = scmp.lt.s32.totalorder %s294, 32
          %s296 = scalar_select %p295, %s294, 32
          %s297 = smul.u32 8, %s296
        $region52: #{tpu_custom_call.1} parent=47 // pred_fallthru
          _
      $region48: #{tpu_custom_call.1} parent=5 // pred_fallthru
        _
      %p298 = scmp.le.s32.totalorder 1, %s18
      %p299 = scmp.lt.s32.totalorder %s18, 3
      %p300 = pnand %p298, %p299
      %p301 = pneg %p300
      // Predicated region
      $region53: #{tpu_custom_call.1} parent=5 // pred_check
        _
      $region54: #{tpu_custom_call.1} parent=5 // pred_check_branch
        %303 = sbr.rel (%p300) target = $region56
      $region55: #{tpu_custom_call.1} parent=5 // pred_region
        %s304 = ssub.s32 %s18, 1
        %s305 = smul.u32 32, %s23
        %s306 = ssub.s32 38, %s305
        %p307 = scmp.lt.s32.totalorder %s306, 32
        %s308 = scalar_select %p307, %s306, 32
        %s309 = smul.u32 8, %s308
        %p310 = scmp.lt.s32.totalorder %s305, 37
        %s311 = scalar_select %p310, %s305, 37
        %s312 = smul.addr %s311, 8
        %s313 = scalar_lea.vmem %s0, %s312
        %p314 = pneg %p44
        %p315 = pneg %p41
        %p316 = pneg %p65
        %p317 = pneg %p62
        %p318 = pneg %p86
        %p319 = pneg %p83
        %p320 = pneg %p107
        %p321 = pneg %p104
        %p322 = pneg %p128
        %p323 = pneg %p125
        %p324 = pneg %p149
        %p325 = pneg %p146
        %p326 = pneg %p170
        %p327 = pneg %p167
        %p328 = pneg %p191
        %p329 = pneg %p188
        %p330 = pneg %p212
        %p331 = pneg %p209
        %p332 = pneg %p238
        %p333 = pneg %p235
        %s334 = sand.u32 %s225, 1
        %s335 = scalar_lea.sflag [#allocation3], %s334
        %s336 = sand.u32 %s225, 1
        %s337 = smul.addr %s336, 4
        %s338 = scalar_lea.vmem [#allocation2], %s337
        %s339 = smul.u32 32, %s23
        %s340 = ssub.s32 38, %s339
        %p341 = scmp.lt.s32.totalorder %s340, 32
        %s342 = scalar_select %p341, %s340, 32
        %s343 = smul.u32 8, %s342
        %p344 = scmp.lt.s32.totalorder %s339, 37
        %s345 = scalar_select %p344, %s339, 37
        %s346 = smul.addr %s345, 8
        %s347 = scalar_lea.vmem %s0, %s346
        %s348 = smul.u32 32, %s23
        %s349 = ssub.s32 38, %s348
        %p350 = scmp.lt.s32.totalorder %s349, 32
        %s351 = scalar_select %p350, %s349, 32
        %s352 = smul.u32 8, %s351
        %s353 = smul.u32 2, %s23
        %s354 = ssub.s32 3, %s353
        %p355 = scmp.lt.s32.totalorder %s354, 2
        %s356 = scalar_select %p355, %s354, 2
        %s357 = smul.u32 2, %s356
        %v358 = vld [vmem:[%s1] sm:$0xff]
        %v359 = vld [vmem:[%s1 + $0x8] sm:$0xff]
        %v360 = vld [vmem:[%s1 + $0x10] sm:$0xff]
        %v361 = vld [vmem:[%s1 + $0x18] sm:$0xff]
        %v362 = vld [vmem:[%s2] sm:$0xff]
        %v363 = vld [vmem:[%s2 + $0x8] sm:$0xff]
        %v364 = vld [vmem:[%s2 + $0x10] sm:$0xff]
        %v365 = vld [vmem:[%s2 + $0x18] sm:$0xff]
        %v366 = vld [vmem:[%s347] sm:$0xff]
        %v367 = vld [vmem:[%s347 + $0x8] sm:$0xff]
        %v368 = vld [vmem:[%s347 + $0x10] sm:$0xff]
        %v369 = vld [vmem:[%s347 + $0x18] sm:$0xff]
        %v370 = vld [vmem:[%s347 + $0x20] sm:$0xff]
        %v371 = vld [vmem:[%s347 + $0x28] sm:$0xff]
        %v372 = vld [vmem:[%s347 + $0x30] sm:$0xff]
        %v373 = vld [vmem:[%s347 + $0x38] sm:$0xff]
        %v374 = vld [vmem:[%s347 + $0x40] sm:$0xff]
        %v375 = vld [vmem:[%s347 + $0x48] sm:$0xff]
        %v376 = vld [vmem:[%s347 + $0x50] sm:$0xff]
        %v377 = vld [vmem:[%s347 + $0x58] sm:$0xff]
        %v378 = vld [vmem:[%s347 + $0x60] sm:$0xff]
        %v379 = vld [vmem:[%s347 + $0x68] sm:$0xff]
        %v380 = vld [vmem:[%s347 + $0x70] sm:$0xff]
        %v381 = vld [vmem:[%s347 + $0x78] sm:$0xff]
        %v382 = vld [vmem:[%s347 + $0x80] sm:$0xff]
        %v383 = vld [vmem:[%s347 + $0x88] sm:$0xff]
        %v384 = vld [vmem:[%s347 + $0x90] sm:$0xff]
        %v385 = vld [vmem:[%s347 + $0x98] sm:$0xff]
        %v386 = vld [vmem:[%s347 + $0xa0] sm:$0xff]
        %v387 = vld [vmem:[%s347 + $0xa8] sm:$0xff]
        %v388 = vld [vmem:[%s347 + $0xb0] sm:$0xff]
        %v389 = vld [vmem:[%s347 + $0xb8] sm:$0xff]
        %v390 = vld [vmem:[%s347 + $0xc0] sm:$0xff]
        %v391 = vld [vmem:[%s347 + $0xc8] sm:$0xff]
        %v392 = vld [vmem:[%s347 + $0xd0] sm:$0xff]
        %v393 = vld [vmem:[%s347 + $0xd8] sm:$0xff]
        %v394 = vld [vmem:[%s347 + $0xe0] sm:$0xff]
        %v395 = vld [vmem:[%s347 + $0xe8] sm:$0xff]
        %v396 = vld [vmem:[%s347 + $0xf0] sm:$0xff]
        %v397 = vld [vmem:[%s347 + $0xf8] sm:$0xff]
        %399 = vset.pattern.permute.xlu0 0
        %400 = vperm.xlu0 %399, %v362
        %v401 = vpop.permute.xlu0 %400
        %404 = vset.pattern.permute.xlu0 0
        %405 = vperm.xlu0 %404, %v363
        %v406 = vpop.permute.xlu0 %405
        %409 = vset.pattern.permute.xlu0 0
        %410 = vperm.xlu0 %409, %v364
        %v411 = vpop.permute.xlu0 %410
        %414 = vset.pattern.permute.xlu0 0
        %415 = vperm.xlu0 %414, %v365
        %v416 = vpop.permute.xlu0 %415
        %vm418 = vcmask 31744
        %v420 = vsel %vm418, %v358, 0
        %v423 = vsel %vm418, %v359, 0
        %v426 = vsel %vm418, %v360, 0
        %v429 = vsel %vm418, %v361, 0
        %v432 = vsel %vm418, %v366, 0
        %v435 = vsel %vm418, %v367, 0
        %v438 = vsel %vm418, %v368, 0
        %v441 = vsel %vm418, %v369, 0
        %v444 = vsel %vm418, %v370, 0
        %v447 = vsel %vm418, %v371, 0
        %v450 = vsel %vm418, %v372, 0
        %v453 = vsel %vm418, %v373, 0
        %v456 = vsel %vm418, %v374, 0
        %v459 = vsel %vm418, %v375, 0
        %v462 = vsel %vm418, %v376, 0
        %v465 = vsel %vm418, %v377, 0
        %v468 = vsel %vm418, %v378, 0
        %v471 = vsel %vm418, %v379, 0
        %v474 = vsel %vm418, %v380, 0
        %v477 = vsel %vm418, %v381, 0
        %v480 = vsel %vm418, %v382, 0
        %v483 = vsel %vm418, %v383, 0
        %v486 = vsel %vm418, %v384, 0
        %v489 = vsel %vm418, %v385, 0
        %v492 = vsel %vm418, %v386, 0
        %v495 = vsel %vm418, %v387, 0
        %v498 = vsel %vm418, %v388, 0
        %v501 = vsel %vm418, %v389, 0
        %v504 = vsel %vm418, %v390, 0
        %v507 = vsel %vm418, %v391, 0
        %v510 = vsel %vm418, %v392, 0
        %v513 = vsel %vm418, %v393, 0
        %v516 = vsel %vm418, %v394, 0
        %v519 = vsel %vm418, %v395, 0
        %v522 = vsel %vm418, %v396, 0
        %v525 = vsel %vm418, %v397, 0
        %527 = vmatpush.xpose.msra.mxu0 %v477
        %528 = vmatpush.xpose.msra.mxu0 %v474
        %529 = vmatpush.xpose.msra.mxu0 %v471
        %530 = vmatpush.xpose.msra.mxu0 %v468
        %531 = vmatpush.xpose.msra.mxu0 %v465
        %532 = vmatpush.xpose.msra.mxu0 %v462
        %533 = vmatpush.xpose.msra.mxu0 %v459
        %534 = vmatpush.xpose.msra.mxu0 %v456
        %535 = vmatpush.xpose.msra.mxu0 %v453
        %536 = vmatpush.xpose.msra.mxu0 %v450
        %537 = vmatpush.xpose.msra.mxu0 %v447
        %538 = vmatpush.xpose.msra.mxu0 %v444
        %539 = vmatpush.xpose.msra.mxu0 %v441
        %540 = vmatpush.xpose.msra.mxu0 %v438
        %541 = vmatpush.xpose.msra.mxu0 %v435
        %542 = vmatpush.xpose.msra.mxu0 %v432
        %543 = vmatmul.f32.gmra.mxu0 %v420
        %v544 = vpop.f32.mrf.mxu0
        %v545 = vadd.f32 %v401, %v544
        %546 = vmatmul.f32.gmra.mxu0 %v423
        %v547 = vpop.f32.mrf.mxu0
        %v548 = vadd.f32 %v406, %v547
        %549 = vmatmul.f32.gmra.mxu0 %v426
        %v550 = vpop.f32.mrf.mxu0
        %v551 = vadd.f32 %v411, %v550
        %552 = vmatmul.f32.gmra.mxu0 %v429
        %v553 = vpop.f32.mrf.mxu0
        %v554 = vadd.f32 %v416, %v553
        %555 = vdwg.mxu0
        %556 = vmatpush.xpose.msra.mxu0 %v525
        %557 = vmatpush.xpose.msra.mxu0 %v522
        %558 = vmatpush.xpose.msra.mxu0 %v519
        %559 = vmatpush.xpose.msra.mxu0 %v516
        %560 = vmatpush.xpose.msra.mxu0 %v513
        %561 = vmatpush.xpose.msra.mxu0 %v510
        %562 = vmatpush.xpose.msra.mxu0 %v507
        %563 = vmatpush.xpose.msra.mxu0 %v504
        %564 = vmatpush.xpose.msra.mxu0 %v501
        %565 = vmatpush.xpose.msra.mxu0 %v498
        %566 = vmatpush.xpose.msra.mxu0 %v495
        %567 = vmatpush.xpose.msra.mxu0 %v492
        %568 = vmatpush.xpose.msra.mxu0 %v489
        %569 = vmatpush.xpose.msra.mxu0 %v486
        %570 = vmatpush.xpose.msra.mxu0 %v483
        %571 = vmatpush.xpose.msra.mxu0 %v480
        %572 = vmatmul.f32.gmra.mxu0 %v420
        %v573 = vpop.f32.mrf.mxu0
        %v574 = vadd.f32 %v401, %v573
        %575 = vmatmul.f32.gmra.mxu0 %v423
        %v576 = vpop.f32.mrf.mxu0
        %v577 = vadd.f32 %v406, %v576
        %578 = vmatmul.f32.gmra.mxu0 %v426
        %v579 = vpop.f32.mrf.mxu0
        %v580 = vadd.f32 %v411, %v579
        %581 = vmatmul.f32.gmra.mxu0 %v429
        %v582 = vpop.f32.mrf.mxu0
        %v583 = vadd.f32 %v416, %v582
        %584 = vdwg.mxu0
        %v585 = vtanh.pop %v545
        %v586 = vtanh.pop %v574
        %v587 = vtanh.pop %v548
        %v588 = vtanh.pop %v577
        %v589 = vtanh.pop %v551
        %v590 = vtanh.pop %v580
        %v591 = vtanh.pop %v554
        %v592 = vtanh.pop %v583
        %v593 = vld [vmem:[%s3] sm:$0xff]
        %v594 = vld [vmem:[%s3 + $0x8] sm:$0xff]
        %v595 = vld [vmem:[%s3 + $0x10] sm:$0xff]
        %v596 = vld [vmem:[%s3 + $0x18] sm:$0xff]
        %v597 = vld [vmem:[%s4] sm:$0xff]
        %v598 = vld [vmem:[%s4 + $0x8] sm:$0xff]
        %v599 = vld [vmem:[%s4 + $0x10] sm:$0xff]
        %v600 = vld [vmem:[%s4 + $0x18] sm:$0xff]
        %602 = vset.pattern.permute.xlu0 0
        %603 = vperm.xlu0 %602, %v597
        %v604 = vpop.permute.xlu0 %603
        %607 = vset.pattern.permute.xlu0 0
        %608 = vperm.xlu0 %607, %v598
        %v609 = vpop.permute.xlu0 %608
        %612 = vset.pattern.permute.xlu0 0
        %613 = vperm.xlu0 %612, %v599
        %v614 = vpop.permute.xlu0 %613
        %617 = vset.pattern.permute.xlu0 0
        %618 = vperm.xlu0 %617, %v600
        %v619 = vpop.permute.xlu0 %618
        %vm621 = vcmask 261120
        %v623 = vsel %vm621, %v593, 0
        %v626 = vsel %vm621, %v594, 0
        %v629 = vsel %vm621, %v595, 0
        %v632 = vsel %vm621, %v596, 0
        %634 = vmatpush.msra.mxu0 0.0
        %635 = vmatpush.msra.mxu0 0.0
        %636 = vmatpush.msra.mxu0 0.0
        %637 = vmatpush.msra.mxu0 0.0
        %638 = vmatpush.msra.mxu0 0.0
        %639 = vmatpush.msra.mxu0 0.0
        %640 = vmatpush.msra.mxu0 0.0
        %641 = vmatpush.msra.mxu0 0.0
        %642 = vmatpush.msra.mxu0 0.0
        %643 = vmatpush.msra.mxu0 0.0
        %644 = vmatpush.msra.mxu0 0.0
        %645 = vmatpush.msra.mxu0 0.0
        %646 = vmatpush.msra.mxu0 %v591
        %647 = vmatpush.msra.mxu0 %v589
        %648 = vmatpush.msra.mxu0 %v587
        %649 = vmatpush.msra.mxu0 %v585
        %650 = vmatmul.f32.gmra.mxu0 %v623
        %v651 = vpop.f32.mrf.mxu0
        %v652 = vadd.f32 %v604, %v651
        %653 = vmatmul.f32.gmra.mxu0 %v626
        %v654 = vpop.f32.mrf.mxu0
        %v655 = vadd.f32 %v609, %v654
        %656 = vmatmul.f32.gmra.mxu0 %v629
        %v657 = vpop.f32.mrf.mxu0
        %v658 = vadd.f32 %v614, %v657
        %659 = vmatmul.f32.gmra.mxu0 %v632
        %v660 = vpop.f32.mrf.mxu0
        %v661 = vadd.f32 %v619, %v660
        %662 = vdwg.mxu0
        %663 = vmatpush.msra.mxu0 0.0
        %664 = vmatpush.msra.mxu0 0.0
        %665 = vmatpush.msra.mxu0 0.0
        %666 = vmatpush.msra.mxu0 0.0
        %667 = vmatpush.msra.mxu0 0.0
        %668 = vmatpush.msra.mxu0 0.0
        %669 = vmatpush.msra.mxu0 0.0
        %670 = vmatpush.msra.mxu0 0.0
        %671 = vmatpush.msra.mxu0 0.0
        %672 = vmatpush.msra.mxu0 0.0
        %673 = vmatpush.msra.mxu0 0.0
        %674 = vmatpush.msra.mxu0 0.0
        %675 = vmatpush.msra.mxu0 %v592
        %676 = vmatpush.msra.mxu0 %v590
        %677 = vmatpush.msra.mxu0 %v588
        %678 = vmatpush.msra.mxu0 %v586
        %679 = vmatmul.f32.gmra.mxu0 %v623
        %v680 = vpop.f32.mrf.mxu0
        %v681 = vadd.f32 %v604, %v680
        %682 = vmatmul.f32.gmra.mxu0 %v626
        %v683 = vpop.f32.mrf.mxu0
        %v684 = vadd.f32 %v609, %v683
        %685 = vmatmul.f32.gmra.mxu0 %v629
        %v686 = vpop.f32.mrf.mxu0
        %v687 = vadd.f32 %v614, %v686
        %688 = vmatmul.f32.gmra.mxu0 %v632
        %v689 = vpop.f32.mrf.mxu0
        %v690 = vadd.f32 %v619, %v689
        %691 = vdwg.mxu0
        %v692 = vtanh.pop %v652
        %v693 = vtanh.pop %v681
        %v694 = vtanh.pop %v655
        %v695 = vtanh.pop %v684
        %v696 = vtanh.pop %v658
        %v697 = vtanh.pop %v687
        %v698 = vtanh.pop %v661
        %v699 = vtanh.pop %v690
        %v700 = vld [vmem:[%s5] sm:$0xff]
        %v701 = vld [vmem:[%s5 + $0x8] sm:$0xff]
        %v702 = vld [vmem:[%s5 + $0x10] sm:$0xff]
        %v703 = vld [vmem:[%s5 + $0x18] sm:$0xff]
        %v704 = vld [vmem:[%s6] sm:$0xff]
        %v705 = vld [vmem:[%s6 + $0x8] sm:$0xff]
        %v706 = vld [vmem:[%s6 + $0x10] sm:$0xff]
        %v707 = vld [vmem:[%s6 + $0x18] sm:$0xff]
        %709 = vset.pattern.permute.xlu0 0
        %710 = vperm.xlu0 %709, %v704
        %v711 = vpop.permute.xlu0 %710
        %714 = vset.pattern.permute.xlu0 0
        %715 = vperm.xlu0 %714, %v705
        %v716 = vpop.permute.xlu0 %715
        %719 = vset.pattern.permute.xlu0 0
        %720 = vperm.xlu0 %719, %v706
        %v721 = vpop.permute.xlu0 %720
        %724 = vset.pattern.permute.xlu0 0
        %725 = vperm.xlu0 %724, %v707
        %v726 = vpop.permute.xlu0 %725
        %v729 = vsel %vm621, %v700, 0
        %v732 = vsel %vm621, %v701, 0
        %v735 = vsel %vm621, %v702, 0
        %v738 = vsel %vm621, %v703, 0
        %740 = vmatpush.msra.mxu0 0.0
        %741 = vmatpush.msra.mxu0 0.0
        %742 = vmatpush.msra.mxu0 0.0
        %743 = vmatpush.msra.mxu0 0.0
        %744 = vmatpush.msra.mxu0 0.0
        %745 = vmatpush.msra.mxu0 0.0
        %746 = vmatpush.msra.mxu0 0.0
        %747 = vmatpush.msra.mxu0 0.0
        %748 = vmatpush.msra.mxu0 0.0
        %749 = vmatpush.msra.mxu0 0.0
        %750 = vmatpush.msra.mxu0 0.0
        %751 = vmatpush.msra.mxu0 0.0
        %752 = vmatpush.msra.mxu0 %v698
        %753 = vmatpush.msra.mxu0 %v696
        %754 = vmatpush.msra.mxu0 %v694
        %755 = vmatpush.msra.mxu0 %v692
        %756 = vmatmul.f32.gmra.mxu0 %v729
        %v757 = vpop.f32.mrf.mxu0
        %v758 = vadd.f32 %v711, %v757
        %759 = vmatmul.f32.gmra.mxu0 %v732
        %v760 = vpop.f32.mrf.mxu0
        %v761 = vadd.f32 %v716, %v760
        %762 = vmatmul.f32.gmra.mxu0 %v735
        %v763 = vpop.f32.mrf.mxu0
        %v764 = vadd.f32 %v721, %v763
        %765 = vmatmul.f32.gmra.mxu0 %v738
        %v766 = vpop.f32.mrf.mxu0
        %v767 = vadd.f32 %v726, %v766
        %768 = vdwg.mxu0
        %769 = vmatpush.msra.mxu0 0.0
        %770 = vmatpush.msra.mxu0 0.0
        %771 = vmatpush.msra.mxu0 0.0
        %772 = vmatpush.msra.mxu0 0.0
        %773 = vmatpush.msra.mxu0 0.0
        %774 = vmatpush.msra.mxu0 0.0
        %775 = vmatpush.msra.mxu0 0.0
        %776 = vmatpush.msra.mxu0 0.0
        %777 = vmatpush.msra.mxu0 0.0
        %778 = vmatpush.msra.mxu0 0.0
        %779 = vmatpush.msra.mxu0 0.0
        %780 = vmatpush.msra.mxu0 0.0
        %781 = vmatpush.msra.mxu0 %v699
        %782 = vmatpush.msra.mxu0 %v697
        %783 = vmatpush.msra.mxu0 %v695
        %784 = vmatpush.msra.mxu0 %v693
        %785 = vmatmul.f32.gmra.mxu0 %v729
        %v786 = vpop.f32.mrf.mxu0
        %v787 = vadd.f32 %v711, %v786
        %788 = vmatmul.f32.gmra.mxu0 %v732
        %v789 = vpop.f32.mrf.mxu0
        %v790 = vadd.f32 %v716, %v789
        %791 = vmatmul.f32.gmra.mxu0 %v735
        %v792 = vpop.f32.mrf.mxu0
        %v793 = vadd.f32 %v721, %v792
        %794 = vmatmul.f32.gmra.mxu0 %v738
        %v795 = vpop.f32.mrf.mxu0
        %v796 = vadd.f32 %v726, %v795
        %797 = vdwg.mxu0
        %v798 = vtanh.pop %v758
        %v799 = vtanh.pop %v787
        %v800 = vtanh.pop %v761
        %v801 = vtanh.pop %v790
        %v802 = vtanh.pop %v764
        %v803 = vtanh.pop %v793
        %v804 = vtanh.pop %v767
        %v805 = vtanh.pop %v796
        %v806 = vld [vmem:[%s7] sm:$0x3]
        %v807 = vld [vmem:[%s8] sm:$0x3]
        %809 = vset.pattern.permute.xlu0 0
        %810 = vperm.xlu0 %809, %v807
        %v811 = vpop.permute.xlu0 %810
        %v814 = vsel %vm621, %v806, 0
        %816 = vmatpush.msra.mxu0 0.0
        %817 = vmatpush.msra.mxu0 0.0
        %818 = vmatpush.msra.mxu0 0.0
        %819 = vmatpush.msra.mxu0 0.0
        %820 = vmatpush.msra.mxu0 0.0
        %821 = vmatpush.msra.mxu0 0.0
        %822 = vmatpush.msra.mxu0 0.0
        %823 = vmatpush.msra.mxu0 0.0
        %824 = vmatpush.msra.mxu0 0.0
        %825 = vmatpush.msra.mxu0 0.0
        %826 = vmatpush.msra.mxu0 0.0
        %827 = vmatpush.msra.mxu0 0.0
        %828 = vmatpush.msra.mxu0 %v804
        %829 = vmatpush.msra.mxu0 %v802
        %830 = vmatpush.msra.mxu0 %v800
        %831 = vmatpush.msra.mxu0 %v798
        %832 = vmatmul.f32.gmra.mxu0 %v814
        %v833 = vpop.f32.mrf.mxu0
        %v834 = vadd.f32 %v811, %v833
        %835 = vdwg.mxu0
        %836 = vmatpush.msra.mxu0 0.0
        %837 = vmatpush.msra.mxu0 0.0
        %838 = vmatpush.msra.mxu0 0.0
        %839 = vmatpush.msra.mxu0 0.0
        %840 = vmatpush.msra.mxu0 0.0
        %841 = vmatpush.msra.mxu0 0.0
        %842 = vmatpush.msra.mxu0 0.0
        %843 = vmatpush.msra.mxu0 0.0
        %844 = vmatpush.msra.mxu0 0.0
        %845 = vmatpush.msra.mxu0 0.0
        %846 = vmatpush.msra.mxu0 0.0
        %847 = vmatpush.msra.mxu0 0.0
        %848 = vmatpush.msra.mxu0 %v805
        %849 = vmatpush.msra.mxu0 %v803
        %850 = vmatpush.msra.mxu0 %v801
        %851 = vmatpush.msra.mxu0 %v799
        %852 = vmatmul.f32.gmra.mxu0 %v814
        %v853 = vpop.f32.mrf.mxu0
        %v854 = vadd.f32 %v811, %v853
        %855 = vdwg.mxu0
        %v858 = vrot.slane %v854, 6
        %vm859 = vcmask 1041408
        %v860 = vsel %vm859, %v834, %v858
        %862 = vst [vmem:[%s338] sm:$0xf] %v860
        %s863 = sand.u32 %s225, 1
        %s864 = scalar_lea.sflag [#allocation3], %s863
        %s865 = sand.u32 %s225, 1
        %s866 = smul.addr %s865, 4
        %s867 = scalar_lea.vmem [#allocation2], %s866
        // Predicated region
        $region57: #{tpu_custom_call.1} parent=55 // pred_check
          %p868 = pneg %p235
        $region58: #{tpu_custom_call.1} parent=55 // pred_check_branch
          %870 = sbr.rel (%p868) target = $region60
        $region59: #{tpu_custom_call.1} parent=55 // pred_region
          %s871 = smul.u32 2, %s23
          %s872 = ssub.s32 3, %s871
          %p873 = scmp.lt.s32.totalorder %s872, 2
          %s874 = scalar_select %p873, %s872, 2
          %s875 = smul.u32 2, %s874
          %s876 = ssub.s32 4, %s875
          %s877 = sshll.u32 %s876, 4
          %878 = vsyncadd %s864, %s877
          %p879 = scmp.ne.s32.totalorder 0, %s875
          %s880 = smul.addr %s871, 2
          %s881 = scalar_lea.hbm %s9, %s880
          %s882 = smul.u32 %s874, 2
          %s883 = sshll.u32 %s882, 4
          %s884 = sshll.u32 %s867, 4
          %s885 = int_to_ptr.vmem [resolvable:$true] %s884
          %s886 = sshll.u32 %s881, 4
          %s887 = int_to_ptr.hbm [resolvable:$true] %s886
          %889 = dma.vmem_to_hbm [thread:$0]  (%p879), %s885, %s883, %s887, %s864
        $region60: #{tpu_custom_call.1} parent=55 // pred_fallthru
          _
      $region56: #{tpu_custom_call.1} parent=5 // pred_fallthru
        _
      %p890 = scmp.le.s32.totalorder 2, %s18
      // Predicated region
      $region61: #{tpu_custom_call.1} parent=5 // pred_check
        %p891 = pneg %p890
      $region62: #{tpu_custom_call.1} parent=5 // pred_check_branch
        %893 = sbr.rel (%p891) target = $region64
      $region63: #{tpu_custom_call.1} parent=5 // pred_region
        %s894 = ssub.s32 %s18, 2
        // Predicated region
        $region65: #{tpu_custom_call.1} parent=63 // pred_check
          %p895 = pneg %p241
        $region66: #{tpu_custom_call.1} parent=63 // pred_check_branch
          %897 = sbr.rel (%p895) target = $region68
        $region67: #{tpu_custom_call.1} parent=63 // pred_region
          %s898 = sand.u32 %s226, 1
          %s899 = scalar_lea.sflag [#allocation3], %s898
          %s900 = sand.u32 %s226, 1
          %s901 = smul.addr %s900, 4
          %s902 = scalar_lea.vmem [#allocation2], %s901
          %904 = dma.done %s899, 64
        $region68: #{tpu_custom_call.1} parent=63 // pred_fallthru
          _
      $region64: #{tpu_custom_call.1} parent=5 // pred_fallthru
        _
    $region6: #{tpu_custom_call.1} parent=1 // loop_footer
      %s22 = sadd.s32 1, %s18
    $region7: #{tpu_custom_call.1} parent=1 // loop_footer_branch
      %17 = sbr.rel target = $region3
    $region8: #{tpu_custom_call.1} parent=1 // loop_exit
      _
    %905 = vsyncpa [#allocation3], 1
    %s906 = scalar_lea.sflag [#allocation3], 1
    %907 = vsyncpa %s906, 1

</llo_original>
